<compile_context>
chip_gen: v6e
topology: v6e:2x2x1
jax: 0.10.0
libtpu: 0.0.40
codegen_flags: <defaults>
</compile_context>

<pallas_src>
import functools

import jax
import jax.numpy as jnp
from jax.experimental import pallas as pl
from jax.experimental.pallas import tpu as pltpu


_VMEM_BUDGET_BYTES = 20 * 1024 * 1024   # conservative: fits v7x's 32 MiB scoped default


def _round_up(v, m):
    return ((v + m - 1) // m) * m


def _vmem_estimate(tb, n1, n2, h, w_bytes):
    """Rough VMEM footprint for one grid step (double-buffered streams)."""
    stream = 2 * tb * (n1 + 2 * n2) * 4          # x/y/ys tiles (f32 in HBM)
    out_b = 2 * tb * 2 * 4
    weights = 2 * ((n1 + n2) * h * w_bytes + 2 * h * 4)   # W1x/W1y + b1 + w2
    interm = 10 * tb * h * 4                     # xh, yh_all (2*tb), h_*, temps
    return stream + out_b + weights + interm


def mine_mlp_kernel(x_ref, y_ref, ys_ref, w1x_ref, w1y_ref, b1_ref, w2_ref,
                    b2_ref, out_ref, *, compute_dtype):
    """One batch tile: T(x ++ y) and T(x ++ y_shuffled), fused.

    out_ref[:, 0] = T_joint, out_ref[:, 1] = T_marginal.
    """
    # Cast to the MXU compute dtype inside the kernel: the f32 batch is read
    # from HBM exactly once (no separate wrapper-side cast pass).
    x = x_ref[...].astype(compute_dtype)     # (TB, n1)
    y = y_ref[...].astype(compute_dtype)     # (TB, n2)
    ys = ys_ref[...].astype(compute_dtype)   # (TB, n2)
    w1x = w1x_ref[...]                       # (n1, H)  resident across grid steps
    w1y = w1y_ref[...]                       # (n2, H)  resident across grid steps
    b1 = b1_ref[...]                         # (1, H)   f32
    w2 = w2_ref[...]                         # (1, H)   f32 (second layer as a row)
    b2 = b2_ref[0]                           # scalar from SMEM

    tb = x_ref.shape[0]

    # Layer 1: shared x-contribution computed once, no lane concat.
    xh = jnp.dot(x, w1x, preferred_element_type=jnp.float32)        # (TB, H)

    # Fuse the two narrow-K matmuls (y and y_shuffled) into a single MXU
    # push/drain over a sublane-stacked (2*TB, n2) operand.
    y_all = jnp.concatenate([y, ys], axis=0)                        # (2*TB, n2)
    yh_all = jnp.dot(y_all, w1y, preferred_element_type=jnp.float32)
    yh = yh_all[:tb]
    ysh = yh_all[tb:]

    # Hoisted bias add, shared by both branches; elementwise math stays f32.
    xhb = xh + b1
    h_joint = jnp.maximum(xhb + yh, 0.0)
    h_marg = jnp.maximum(xhb + ysh, 0.0)

    # Layer 2 as VPU multiply + lane reduction (avoids a 1-output-lane MXU op);
    # results written straight into the output layout (no lane concatenate).
    out_ref[:, 0:1] = jnp.sum(h_joint * w2, axis=-1, keepdims=True) + b2
    out_ref[:, 1:2] = jnp.sum(h_marg * w2, axis=-1, keepdims=True) + b2


def init_mine_params(key, n1, n2, num_hidden):
    """Deterministic init matching nn.Linear default (uniform +- 1/sqrt(fan_in))."""
    k1, k2, k3, k4 = jax.random.split(key, 4)
    fan1 = n1 + n2
    bound1 = 1.0 / float(fan1) ** 0.5
    w1 = jax.random.uniform(k1, (fan1, num_hidden), jnp.float32, -bound1, bound1)
    b1 = jax.random.uniform(k2, (1, num_hidden), jnp.float32, -bound1, bound1)
    bound2 = 1.0 / float(num_hidden) ** 0.5
    w2 = jax.random.uniform(k3, (num_hidden, 1), jnp.float32, -bound2, bound2)
    b2 = jax.random.uniform(k4, (1, 1), jnp.float32, -bound2, bound2)
    return w1, b1, w2, b2


@functools.partial(jax.jit, static_argnames=("batch_tile", "compute_dtype"))
def _mine_mlp_pallas(x2, y2, y_shuf, w1, b1, w2, b2, *, batch_tile,
                     compute_dtype):
    """Run the fused MLP kernel over the (already noised/shuffled) batch."""
    B, n1 = x2.shape
    n2 = y2.shape[1]
    H = w1.shape[1]
    w_bytes = jnp.dtype(compute_dtype).itemsize

    # --- batch tile selection -------------------------------------------------
    # (8,128) sublane rule: the batch tile must be a multiple of 8.
    tb = _round_up(max(int(batch_tile), 8), 8)
    # Never larger than the (8-rounded) batch.
    tb = min(tb, _round_up(B, 8))
    # Keep grid length >= 2 when the batch allows it so the "parallel" batch
    # axis actually shards across both v7x TensorCores.
    if B >= 16:
        tb = min(tb, _round_up((B + 1) // 2, 8))
    # Clamp by VMEM budget (v7x: 64 MiB physical, 32 MiB scoped default).
    while tb > 8 and _vmem_estimate(tb, n1, n2, H, w_bytes) > _VMEM_BUDGET_BYTES:
        tb = max(8, _round_up(tb // 2, 8))
    vmem_est = _vmem_estimate(tb, n1, n2, H, w_bytes)
    vmem_limit = int(min(48 * 2**20, max(32 * 2**20, 2 * vmem_est)))

    # --- batch handling (no full pad pass) -----------------------------------
    # Only tiny batches (< one 8-row sublane tile) get padded; otherwise the
    # ragged last tile is handled by the cdiv grid + Pallas boundary masking
    # (out-of-bounds rows are row-independent garbage and sliced off below).
    B_k = B
    if B < 8:
        pad = ((0, 8 - B), (0, 0))
        x2 = jnp.pad(x2, pad)
        y2 = jnp.pad(y2, pad)
        y_shuf = jnp.pad(y_shuf, pad)
        B_k = 8
    grid = (pl.cdiv(B_k, tb),)

    # --- weight prep ----------------------------------------------------------
    # Split W1 so the kernel never concats on the lane axis; weights are small
    # and resident, so casting them once in the wrapper is negligible.
    w1x_c = w1[:n1].astype(compute_dtype)
    w1y_c = w1[n1:].astype(compute_dtype)
    b1_r = jnp.asarray(b1, jnp.float32).reshape(1, H)
    w2_row = jnp.asarray(w2, jnp.float32).reshape(1, H)
    b2_s = jnp.asarray(b2, jnp.float32).reshape(1)

    out = pl.pallas_call(
        functools.partial(mine_mlp_kernel, compute_dtype=compute_dtype),
        out_shape=jax.ShapeDtypeStruct((B_k, 2), jnp.float32),
        grid=grid,
        in_specs=[
            pl.BlockSpec((tb, n1), lambda i: (i, 0)),   # x tile (streams, f32)
            pl.BlockSpec((tb, n2), lambda i: (i, 0)),   # y tile (streams, f32)
            pl.BlockSpec((tb, n2), lambda i: (i, 0)),   # y shuffled tile
            pl.BlockSpec((n1, H), lambda i: (0, 0)),    # W1x (resident)
            pl.BlockSpec((n2, H), lambda i: (0, 0)),    # W1y (resident)
            pl.BlockSpec((1, H), lambda i: (0, 0)),     # b1  (resident, f32)
            pl.BlockSpec((1, H), lambda i: (0, 0)),     # w2 row (resident, f32)
            pl.BlockSpec(memory_space=pltpu.MemorySpace.SMEM),  # b2 scalar
        ],
        out_specs=pl.BlockSpec((tb, 2), lambda i: (i, 0)),
        compiler_params=pltpu.CompilerParams(
            dimension_semantics=("parallel",),
            vmem_limit_bytes=vmem_limit),
    )(x2, y2, y_shuf, w1x_c, w1y_c, b1_r, w2_row, b2_s)

    return out[:B, 0:1], out[:B, 1:2]


def mine_forward(x, y, params, *, key, noise_std=0.1, target=False,
                 batch_tile=512, compute_dtype=jnp.bfloat16):
    """Equivalent of MINE.forward(x, y, target) -> (T_joint, T_marginal)."""
    w1, b1, w2, b2 = params
    x = x.astype(jnp.float32)
    y = y.astype(jnp.float32)

    k_noise, k_perm = jax.random.split(key, 2)
    scale = 2.0 if target else noise_std
    y = y + scale * jax.random.normal(k_noise, y.shape, jnp.float32)

    B = x.shape[0]
    x2 = x.reshape(B, -1)
    y2 = y.reshape(B, -1)
    perm = jax.random.permutation(k_perm, B)
    # TODO(synk): if n2 is comparable to n1, fuse this gather into the kernel
    # via PrefetchScalarGridSpec + per-row Element index_map instead of
    # materializing y_shuf in HBM (extra pass over y).  For n2 << n1 leave it.
    y_shuf = y2[perm]

    n1 = x2.shape[1]
    n2 = y2.shape[1]
    assert w1.shape[0] == n1 + n2

    return _mine_mlp_pallas(x2, y2, y_shuf, w1, b1, w2, b2,
                            batch_tile=batch_tile, compute_dtype=compute_dtype)


def mine_lower_bound_kl(T_joint, T_marginal):
    """MINE.lower_bound(method='kl') (glue in plain JAX; scalar reduction)."""
    mine = jnp.mean(T_joint) - jnp.log(jnp.mean(jnp.exp(T_marginal)))
    return -mine


def _reference_forward(x2, y2, y_shuf, params):
    """Pure-JAX f32 reference (same noised/shuffled inputs)."""
    w1, b1, w2, b2 = params
    zj = jnp.concatenate([x2, y2], axis=1)
    zm = jnp.concatenate([x2, y_shuf], axis=1)
    hj = jnp.maximum(zj @ w1 + b1, 0.0)
    hm = jnp.maximum(zm @ w1 + b1, 0.0)
    return hj @ w2 + b2, hm @ w2 + b2


def _check_case(B, x_shape_rest, n2, num_hidden, batch_tile, key, *,
                compute_dtype, atol, rtol):
    kx, ky, kp, kf = jax.random.split(key, 4)
    x = jax.random.normal(kx, (B,) + x_shape_rest, jnp.float32)
    y = jax.random.normal(ky, (B, n2), jnp.float32)
    n1 = 1
    for d in x_shape_rest:
        n1 *= d
    params = init_mine_params(kp, n1, n2, num_hidden)

    T_joint, T_marginal = mine_forward(
        x, y, params, key=kf, noise_std=0.1, target=False,
        batch_tile=batch_tile, compute_dtype=compute_dtype)
    jax.block_until_ready((T_joint, T_marginal))

    # Reproduce the same noised / shuffled inputs for a pure-JAX reference.
    k_noise, k_perm = jax.random.split(kf, 2)
    y_noised = y + 0.1 * jax.random.normal(k_noise, y.shape, jnp.float32)
    x2 = x.reshape(B, -1)
    y2 = y_noised.reshape(B, -1)
    perm = jax.random.permutation(k_perm, B)
    tj_ref, tm_ref = _reference_forward(x2, y2, y2[perm], params)

    assert T_joint.shape == (B, 1) and T_marginal.shape == (B, 1)
    assert jnp.allclose(T_joint, tj_ref, atol=atol, rtol=rtol), "T_joint mismatch"
    assert jnp.allclose(T_marginal, tm_ref, atol=atol, rtol=rtol), "T_marginal mismatch"
    return T_joint, T_marginal


if __name__ == "__main__":
    key = jax.random.PRNGKey(0)
    k_a, k_b, k_c = jax.random.split(key, 3)

    # Case 1: small conv-style activation, single batch tile, f32 exact path.
    # x: (8, 4, 8, 8) -> n1 = 256; y: (8, 32) -> n2 = 32; hidden = 32.
    tj, tm = _check_case(B=8, x_shape_rest=(4, 8, 8), n2=32, num_hidden=32,
                         batch_tile=512, key=k_a,
                         compute_dtype=jnp.float32, atol=1e-5, rtol=1e-5)

    # Case 2: non-multiple-of-tile batch exercising the ragged cdiv-grid path
    # (no host-side pad) with the default bf16 MXU path.
    _check_case(B=20, x_shape_rest=(4, 8, 8), n2=32, num_hidden=32,
                batch_tile=8, key=k_b,
                compute_dtype=jnp.bfloat16, atol=5e-2, rtol=5e-2)

    # Case 3: tiny batch (< 8) exercising the minimal-pad path, bf16.
    _check_case(B=2, x_shape_rest=(4, 16, 16), n2=32, num_hidden=64,
                batch_tile=512, key=k_c,
                compute_dtype=jnp.bfloat16, atol=5e-2, rtol=5e-2)

    # Optional: the KL lower bound, as in MINE.lower_bound(method='kl').
    neg_mine = mine_lower_bound_kl(tj, tm)
    jax.block_until_ready(neg_mine)

    print("KERNEL_OK")
</pallas_src>

<mosaic_0001>
module attributes {stable_mosaic.version = 11 : i64} {
  func.func @mine_mlp_kernel(%arg0: i32, %arg1: memref<8x256xf32, #tpu.memory_space<vmem>>, %arg2: memref<8x32xf32, #tpu.memory_space<vmem>>, %arg3: memref<8x32xf32, #tpu.memory_space<vmem>>, %arg4: memref<256x32xf32, #tpu.memory_space<vmem>>, %arg5: memref<32x32xf32, #tpu.memory_space<vmem>>, %arg6: memref<1x32xf32, #tpu.memory_space<vmem>>, %arg7: memref<1x32xf32, #tpu.memory_space<vmem>>, %arg8: memref<1xf32, #tpu.memory_space<smem>>, %arg9: memref<8x2xf32, #tpu.memory_space<vmem>>) attributes {dimension_semantics = [#tpu.dimension_semantics<parallel>], iteration_bounds = array<i64: 1>, scalar_prefetch = 0 : i64, scratch_operands = 0 : i64, tpu.core_type = #tpu.core_type<tc>, window_params = [{transform_indices = @transform_0, window_bounds = array<i64: 8, 256>}, {transform_indices = @transform_1, window_bounds = array<i64: 8, 32>}, {transform_indices = @transform_2, window_bounds = array<i64: 8, 32>}, {pipeline_mode = #tpu.pipeline_mode<synchronous>, transform_indices = @transform_3, window_bounds = array<i64: 256, 32>}, {pipeline_mode = #tpu.pipeline_mode<synchronous>, transform_indices = @transform_4, window_bounds = array<i64: 32, 32>}, {pipeline_mode = #tpu.pipeline_mode<synchronous>, transform_indices = @transform_5, window_bounds = array<i64: 1, 32>}, {pipeline_mode = #tpu.pipeline_mode<synchronous>, transform_indices = @transform_6, window_bounds = array<i64: 1, 32>}, {transform_indices = @transform_7, window_bounds = array<i64: 1>}, {transform_indices = @transform_8, window_bounds = array<i64: 8, 2>}]} {
    %c0 = arith.constant 0 : index
    %c0_0 = arith.constant 0 : index
    %0 = vector.load %arg1[%c0, %c0_0] : memref<8x256xf32, #tpu.memory_space<vmem>>, vector<8x256xf32>
    %c0_1 = arith.constant 0 : index
    %c0_2 = arith.constant 0 : index
    %1 = vector.load %arg2[%c0_1, %c0_2] : memref<8x32xf32, #tpu.memory_space<vmem>>, vector<8x32xf32>
    %c0_3 = arith.constant 0 : index
    %c0_4 = arith.constant 0 : index
    %2 = vector.load %arg3[%c0_3, %c0_4] : memref<8x32xf32, #tpu.memory_space<vmem>>, vector<8x32xf32>
    %c0_5 = arith.constant 0 : index
    %c0_6 = arith.constant 0 : index
    %3 = vector.load %arg4[%c0_5, %c0_6] : memref<256x32xf32, #tpu.memory_space<vmem>>, vector<256x32xf32>
    %c0_7 = arith.constant 0 : index
    %c0_8 = arith.constant 0 : index
    %4 = vector.load %arg5[%c0_7, %c0_8] : memref<32x32xf32, #tpu.memory_space<vmem>>, vector<32x32xf32>
    %c0_9 = arith.constant 0 : index
    %c0_10 = arith.constant 0 : index
    %5 = vector.load %arg6[%c0_9, %c0_10] : memref<1x32xf32, #tpu.memory_space<vmem>>, vector<1x32xf32>
    %c0_11 = arith.constant 0 : index
    %c0_12 = arith.constant 0 : index
    %6 = vector.load %arg7[%c0_11, %c0_12] : memref<1x32xf32, #tpu.memory_space<vmem>>, vector<1x32xf32>
    %c0_13 = arith.constant 0 : index
    %7 = memref.load %arg8[%c0_13] : memref<1xf32, #tpu.memory_space<smem>>
    %cst = arith.constant dense<0.000000e+00> : vector<8x32xf32>
    %8 = tpu.matmul %0, %3, %cst {dimension_numbers = #tpu.dot_dimension_numbers<[1], [0], [0], [1], [0, 0, 1, 1], [], []>} : vector<8x256xf32>, vector<256x32xf32>, vector<8x32xf32> -> vector<8x32xf32>
    %9 = tpu.concatenate %1, %2 in 0 : vector<8x32xf32>, vector<8x32xf32> -> vector<16x32xf32>
    %cst_14 = arith.constant dense<0.000000e+00> : vector<16x32xf32>
    %10 = tpu.matmul %9, %4, %cst_14 {dimension_numbers = #tpu.dot_dimension_numbers<[1], [0], [0], [1], [0, 0, 1, 1], [], []>} : vector<16x32xf32>, vector<32x32xf32>, vector<16x32xf32> -> vector<16x32xf32>
    %11 = vector.extract_strided_slice %10 {offsets = [0, 0], sizes = [8, 32], strides = [1, 1]} : vector<16x32xf32> to vector<8x32xf32>
    %12 = vector.extract_strided_slice %10 {offsets = [8, 0], sizes = [8, 32], strides = [1, 1]} : vector<16x32xf32> to vector<8x32xf32>
    %13 = vector.broadcast %5 : vector<1x32xf32> to vector<8x32xf32>
    %14 = arith.addf %8, %13 : vector<8x32xf32>
    %15 = arith.addf %14, %11 : vector<8x32xf32>
    %cst_15 = arith.constant 0.000000e+00 : f32
    %16 = vector.broadcast %cst_15 : f32 to vector<8x32xf32>
    %17 = arith.maximumf %15, %16 : vector<8x32xf32>
    %18 = arith.addf %14, %12 : vector<8x32xf32>
    %cst_16 = arith.constant 0.000000e+00 : f32
    %19 = vector.broadcast %cst_16 : f32 to vector<8x32xf32>
    %20 = arith.maximumf %18, %19 : vector<8x32xf32>
    %21 = vector.broadcast %6 : vector<1x32xf32> to vector<8x32xf32>
    %22 = arith.mulf %17, %21 : vector<8x32xf32>
    %cst_17 = arith.constant dense<0.000000e+00> : vector<8xf32>
    %23 = vector.multi_reduction <add>, %22, %cst_17 [1] : vector<8x32xf32> to vector<8xf32>
    %24 = vector.shape_cast %23 : vector<8xf32> to vector<8x1xf32>
    %25 = vector.broadcast %7 : f32 to vector<8x1xf32>
    %26 = arith.addf %24, %25 : vector<8x1xf32>
    %c0_18 = arith.constant 0 : index
    %c0_19 = arith.constant 0 : index
    %27 = vector.load %arg9[%c0_18, %c0_19] : memref<8x2xf32, #tpu.memory_space<vmem>>, vector<8x1xf32>
    tpu.vector_store %arg9[%c0_18, %c0_19], %26 {strides = array<i32>} : memref<8x2xf32, #tpu.memory_space<vmem>>, vector<8x1xf32>,
    %28 = vector.broadcast %6 : vector<1x32xf32> to vector<8x32xf32>
    %29 = arith.mulf %20, %28 : vector<8x32xf32>
    %cst_20 = arith.constant dense<0.000000e+00> : vector<8xf32>
    %30 = vector.multi_reduction <add>, %29, %cst_20 [1] : vector<8x32xf32> to vector<8xf32>
    %31 = vector.shape_cast %30 : vector<8xf32> to vector<8x1xf32>
    %32 = vector.broadcast %7 : f32 to vector<8x1xf32>
    %33 = arith.addf %31, %32 : vector<8x1xf32>
    %c0_21 = arith.constant 0 : index
    %c1 = arith.constant 1 : index
    %34 = vector.load %arg9[%c0_21, %c1] : memref<8x2xf32, #tpu.memory_space<vmem>>, vector<8x1xf32>
    tpu.vector_store %arg9[%c0_21, %c1], %33 {strides = array<i32>} : memref<8x2xf32, #tpu.memory_space<vmem>>, vector<8x1xf32>,
    return
  }
  func.func @transform_0(%arg0: i32) -> (i32, i32) {
    %c0_i32 = arith.constant 0 : i32
    %c0_i32_0 = arith.constant 0 : i32
    return %arg0, %c0_i32 : i32, i32
  }
  func.func @transform_1(%arg0: i32) -> (i32, i32) {
    %c0_i32 = arith.constant 0 : i32
    %c0_i32_0 = arith.constant 0 : i32
    return %arg0, %c0_i32 : i32, i32
  }
  func.func @transform_2(%arg0: i32) -> (i32, i32) {
    %c0_i32 = arith.constant 0 : i32
    %c0_i32_0 = arith.constant 0 : i32
    return %arg0, %c0_i32 : i32, i32
  }
  func.func @transform_3(%arg0: i32) -> (i32, i32) {
    %c0_i32 = arith.constant 0 : i32
    %c0_i32_0 = arith.constant 0 : i32
    %c0_i32_1 = arith.constant 0 : i32
    return %c0_i32, %c0_i32_0 : i32, i32
  }
  func.func @transform_4(%arg0: i32) -> (i32, i32) {
    %c0_i32 = arith.constant 0 : i32
    %c0_i32_0 = arith.constant 0 : i32
    %c0_i32_1 = arith.constant 0 : i32
    return %c0_i32, %c0_i32_0 : i32, i32
  }
  func.func @transform_5(%arg0: i32) -> (i32, i32) {
    %c0_i32 = arith.constant 0 : i32
    %c0_i32_0 = arith.constant 0 : i32
    %c0_i32_1 = arith.constant 0 : i32
    return %c0_i32, %c0_i32_0 : i32, i32
  }
  func.func @transform_6(%arg0: i32) -> (i32, i32) {
    %c0_i32 = arith.constant 0 : i32
    %c0_i32_0 = arith.constant 0 : i32
    %c0_i32_1 = arith.constant 0 : i32
    return %c0_i32, %c0_i32_0 : i32, i32
  }
  func.func @transform_7(%arg0: i32) -> i32 {
    %c0_i32 = arith.constant 0 : i32
    %c0_i32_0 = arith.constant 0 : i32
    return %c0_i32 : i32
  }
  func.func @transform_8(%arg0: i32) -> (i32, i32) {
    %c0_i32 = arith.constant 0 : i32
    %c0_i32_0 = arith.constant 0 : i32
    return %arg0, %c0_i32 : i32, i32
  }
}

</mosaic_0001>

<llo_original>
// kernel: _mine_mlp_pallas.1
$region0: #{_mine_mlp_pallas.1}
  #allocation0 [shape = 'u32[]', space=smem, size = 0x4, offset = 0x4, fixed_abs, tag = 'smem constant byte address 0x4 - core index']
  #allocation1 [shape = 'u32[144,128]{1,0:T(1,128)}', space=vmem, size = 0x12000, scoped, tag = 'internal scratch']
  #allocation2 [shape = 'f32[1]{0:T(128)S(6)}', space=smem, size = 0x200, scoped, tag = 'scoped memory for _mine_mlp_pallas.1']
  %s0 = inlined_call_operand.vmem [shape: f32[8,256], index: 0, kind: input, shape index: {}]
  %s1 = inlined_call_operand.vmem [shape: f32[8,32], index: 1, kind: input, shape index: {}]
  %s2 = inlined_call_operand.vmem [shape: f32[8,32], index: 2, kind: input, shape index: {}]
  %s3 = inlined_call_operand.vmem [shape: f32[256,32], index: 3, kind: input, shape index: {}]
  %s4 = inlined_call_operand.vmem [shape: f32[32,32], index: 4, kind: input, shape index: {}]
  %s5 = inlined_call_operand.vmem [shape: f32[1,32], index: 5, kind: input, shape index: {}]
  %s6 = inlined_call_operand.vmem [shape: f32[1,32], index: 6, kind: input, shape index: {}]
  %s7 = inlined_call_operand.<no memory space> [shape: f32[1], index: 7, kind: input, shape index: {}]
  %s8 = inlined_call_operand.vmem [shape: f32[8,2], index: 8, kind: output, shape index: {}]
  %s9 = sld [smem:[#allocation0]]
  $region42: #{_mine_mlp_pallas.1} parent=0
    _
  %s11 = ssub.s32 1, %s9
  %s12 = scalar_select 0, %s11, %s9
  %13 = sst [smem:[#allocation2]] %s7
  // Predicated region
  $region2: #{_mine_mlp_pallas.1} parent=0 // pred_check
    _
  $region3: #{_mine_mlp_pallas.1} parent=0 // pred_check_branch
    %15 = sbr.rel (0) target = $region5
  $region4: #{_mine_mlp_pallas.1} parent=0 // pred_region
    _
  $region5: #{_mine_mlp_pallas.1} parent=0 // pred_fallthru
    _
  // Predicated region
  $region6: #{_mine_mlp_pallas.1} parent=0 // pred_check
    _
  $region7: #{_mine_mlp_pallas.1} parent=0 // pred_check_branch
    %17 = sbr.rel (0) target = $region9
  $region8: #{_mine_mlp_pallas.1} parent=0 // pred_region
    _
  $region9: #{_mine_mlp_pallas.1} parent=0 // pred_fallthru
    _
  // Predicated region
  $region10: #{_mine_mlp_pallas.1} parent=0 // pred_check
    _
  $region11: #{_mine_mlp_pallas.1} parent=0 // pred_check_branch
    %19 = sbr.rel (0) target = $region13
  $region12: #{_mine_mlp_pallas.1} parent=0 // pred_region
    _
  $region13: #{_mine_mlp_pallas.1} parent=0 // pred_fallthru
    _
  // Predicated region
  $region14: #{_mine_mlp_pallas.1} parent=0 // pred_check
    _
  $region15: #{_mine_mlp_pallas.1} parent=0 // pred_check_branch
    %21 = sbr.rel (0) target = $region17
  $region16: #{_mine_mlp_pallas.1} parent=0 // pred_region
    _
  $region17: #{_mine_mlp_pallas.1} parent=0 // pred_fallthru
    _
  // Predicated region
  $region18: #{_mine_mlp_pallas.1} parent=0 // pred_check
    _
  $region19: #{_mine_mlp_pallas.1} parent=0 // pred_check_branch
    %23 = sbr.rel (0) target = $region21
  $region20: #{_mine_mlp_pallas.1} parent=0 // pred_region
    _
  $region21: #{_mine_mlp_pallas.1} parent=0 // pred_fallthru
    _
  // Predicated region
  $region22: #{_mine_mlp_pallas.1} parent=0 // pred_check
    _
  $region23: #{_mine_mlp_pallas.1} parent=0 // pred_check_branch
    %25 = sbr.rel (0) target = $region25
  $region24: #{_mine_mlp_pallas.1} parent=0 // pred_region
    _
  $region25: #{_mine_mlp_pallas.1} parent=0 // pred_fallthru
    _
  // Predicated region
  $region26: #{_mine_mlp_pallas.1} parent=0 // pred_check
    _
  $region27: #{_mine_mlp_pallas.1} parent=0 // pred_check_branch
    %27 = sbr.rel (0) target = $region29
  $region28: #{_mine_mlp_pallas.1} parent=0 // pred_region
    _
  $region29: #{_mine_mlp_pallas.1} parent=0 // pred_fallthru
    _
  // Predicated region
  $region30: #{_mine_mlp_pallas.1} parent=0 // pred_check
    _
  $region31: #{_mine_mlp_pallas.1} parent=0 // pred_check_branch
    %29 = sbr.rel (0) target = $region33
  $region32: #{_mine_mlp_pallas.1} parent=0 // pred_region
    _
  $region33: #{_mine_mlp_pallas.1} parent=0 // pred_fallthru
    _
  %v30 = vld [vmem:[%s0] sm:$0xff]
  %v31 = vld [vmem:[%s0 + $0x8] sm:$0xff]
  %v32 = vld [vmem:[%s1] sm:$0xff]
  %v33 = vld [vmem:[%s2] sm:$0xff]
  %v34 = vld [vmem:[%s3] sm:$0xff]
  %v35 = vld [vmem:[%s3 + $0x8] sm:$0xff]
  %v36 = vld [vmem:[%s3 + $0x10] sm:$0xff]
  %v37 = vld [vmem:[%s3 + $0x18] sm:$0xff]
  %v38 = vld [vmem:[%s3 + $0x20] sm:$0xff]
  %v39 = vld [vmem:[%s3 + $0x28] sm:$0xff]
  %v40 = vld [vmem:[%s3 + $0x30] sm:$0xff]
  %v41 = vld [vmem:[%s3 + $0x38] sm:$0xff]
  %v42 = vld [vmem:[%s3 + $0x40] sm:$0xff]
  %v43 = vld [vmem:[%s3 + $0x48] sm:$0xff]
  %v44 = vld [vmem:[%s3 + $0x50] sm:$0xff]
  %v45 = vld [vmem:[%s3 + $0x58] sm:$0xff]
  %v46 = vld [vmem:[%s3 + $0x60] sm:$0xff]
  %v47 = vld [vmem:[%s3 + $0x68] sm:$0xff]
  %v48 = vld [vmem:[%s3 + $0x70] sm:$0xff]
  %v49 = vld [vmem:[%s3 + $0x78] sm:$0xff]
  %v50 = vld [vmem:[%s3 + $0x80] sm:$0xff]
  %v51 = vld [vmem:[%s3 + $0x88] sm:$0xff]
  %v52 = vld [vmem:[%s3 + $0x90] sm:$0xff]
  %v53 = vld [vmem:[%s3 + $0x98] sm:$0xff]
  %v54 = vld [vmem:[%s3 + $0xa0] sm:$0xff]
  %v55 = vld [vmem:[%s3 + $0xa8] sm:$0xff]
  %v56 = vld [vmem:[%s3 + $0xb0] sm:$0xff]
  %v57 = vld [vmem:[%s3 + $0xb8] sm:$0xff]
  %v58 = vld [vmem:[%s3 + $0xc0] sm:$0xff]
  %v59 = vld [vmem:[%s3 + $0xc8] sm:$0xff]
  %v60 = vld [vmem:[%s3 + $0xd0] sm:$0xff]
  %v61 = vld [vmem:[%s3 + $0xd8] sm:$0xff]
  %v62 = vld [vmem:[%s3 + $0xe0] sm:$0xff]
  %v63 = vld [vmem:[%s3 + $0xe8] sm:$0xff]
  %v64 = vld [vmem:[%s3 + $0xf0] sm:$0xff]
  %v65 = vld [vmem:[%s3 + $0xf8] sm:$0xff]
  %v66 = vld [vmem:[%s4] sm:$0xff]
  %v67 = vld [vmem:[%s4 + $0x8] sm:$0xff]
  %v68 = vld [vmem:[%s4 + $0x10] sm:$0xff]
  %v69 = vld [vmem:[%s4 + $0x18] sm:$0xff]
  %v70 = vld [vmem:[%s5] sm:$0x1]
  %v71 = vld [vmem:[%s6] sm:$0x1]
  %s72 = sld [smem:[#allocation2]]
  %vm73 = vcmask 261120
  %v75 = vsel %vm73, %v32, 0
  %v78 = vsel %vm73, %v33, 0
  %80 = vmatprep.subr.mxu0 0.0
  %81 = vmatpush1.msra.mxu0 0.0
  %82 = vmatprep.subr.mxu0 0.0
  %83 = vmatpush1.msra.mxu0 0.0
  %84 = vmatprep.subr.mxu0 0.0
  %85 = vmatpush1.msra.mxu0 0.0
  %86 = vmatprep.subr.mxu0 0.0
  %87 = vmatpush1.msra.mxu0 0.0
  %88 = vmatprep.subr.mxu0 0.0
  %89 = vmatpush1.msra.mxu0 0.0
  %90 = vmatprep.subr.mxu0 0.0
  %91 = vmatpush1.msra.mxu0 0.0
  %92 = vmatprep.subr.mxu0 0.0
  %93 = vmatpush1.msra.mxu0 0.0
  %94 = vmatprep.subr.mxu0 0.0
  %95 = vmatpush1.msra.mxu0 0.0
  %96 = vmatprep.subr.mxu0 0.0
  %97 = vmatpush1.msra.mxu0 0.0
  %98 = vmatprep.subr.mxu0 0.0
  %99 = vmatpush1.msra.mxu0 0.0
  %100 = vmatprep.subr.mxu0 0.0
  %101 = vmatpush1.msra.mxu0 0.0
  %102 = vmatprep.subr.mxu0 0.0
  %103 = vmatpush1.msra.mxu0 0.0
  %104 = vmatprep.subr.mxu0 0.0
  %105 = vmatpush1.msra.mxu0 %v69
  %106 = vmatprep.subr.mxu0 0.0
  %107 = vmatpush1.msra.mxu0 %v68
  %108 = vmatprep.subr.mxu0 0.0
  %109 = vmatpush1.msra.mxu0 %v67
  %110 = vmatprep.subr.mxu0 0.0
  %111 = vmatpush1.msra.mxu0 %v66
  %112 = vmatprep.subr.mxu0 0.0
  %113 = vmatpush2.msra.mxu0 0.0
  %114 = vmatprep.subr.mxu0 0.0
  %115 = vmatpush2.msra.mxu0 0.0
  %116 = vmatprep.subr.mxu0 0.0
  %117 = vmatpush2.msra.mxu0 0.0
  %118 = vmatprep.subr.mxu0 0.0
  %119 = vmatpush2.msra.mxu0 0.0
  %120 = vmatprep.subr.mxu0 0.0
  %121 = vmatpush2.msra.mxu0 0.0
  %122 = vmatprep.subr.mxu0 0.0
  %123 = vmatpush2.msra.mxu0 0.0
  %124 = vmatprep.subr.mxu0 0.0
  %125 = vmatpush2.msra.mxu0 0.0
  %126 = vmatprep.subr.mxu0 0.0
  %127 = vmatpush2.msra.mxu0 0.0
  %128 = vmatprep.subr.mxu0 0.0
  %129 = vmatpush2.msra.mxu0 0.0
  %130 = vmatprep.subr.mxu0 0.0
  %131 = vmatpush2.msra.mxu0 0.0
  %132 = vmatprep.subr.mxu0 0.0
  %133 = vmatpush2.msra.mxu0 0.0
  %134 = vmatprep.subr.mxu0 0.0
  %135 = vmatpush2.msra.mxu0 0.0
  %136 = vmatprep.subr.mxu0 0.0
  %137 = vmatpush2.msra.mxu0 0.0
  %138 = vmatprep.subr.mxu0 0.0
  %139 = vmatpush2.msra.mxu0 0.0
  %140 = vmatprep.subr.mxu0 0.0
  %141 = vmatpush2.msra.mxu0 0.0
  %142 = vmatprep.subr.mxu0 0.0
  %143 = vmatpush2.msra.mxu0 0.0
  %144 = vmatprep.mubr.f32.mxu0 0.0
  %145 = vmatmul.mubr.f32.gmra.mxu0 %v75
  %v146 = vpop.f32.mrf.mxu0
  %v147 = vadd.f32 0.0, %v146
  %v148 = vpop.f32.mrf.mxu0
  %149 = vmatprep.mubr.f32.mxu0 0.0
  %150 = vmatmul.mubr.f32.gmra.mxu0 %v78
  %v151 = vpop.f32.mrf.mxu0
  %v152 = vadd.f32 0.0, %v151
  %v153 = vpop.f32.mrf.mxu0
  %154 = vdwg.mxu0
  %v156 = vlaneseq
  %v157 = vshrl.u32 %v156, 7
  %v158 = vsub.s32 0, %v157
  %v159 = vrot.slane %v70, %v158
  %161 = vmatprep.subr.mxu0 0.0
  %162 = vmatpush1.msra.mxu0 %v49
  %163 = vmatprep.subr.mxu0 0.0
  %164 = vmatpush1.msra.mxu0 %v48
  %165 = vmatprep.subr.mxu0 0.0
  %166 = vmatpush1.msra.mxu0 %v47
  %167 = vmatprep.subr.mxu0 0.0
  %168 = vmatpush1.msra.mxu0 %v46
  %169 = vmatprep.subr.mxu0 0.0
  %170 = vmatpush1.msra.mxu0 %v45
  %171 = vmatprep.subr.mxu0 0.0
  %172 = vmatpush1.msra.mxu0 %v44
  %173 = vmatprep.subr.mxu0 0.0
  %174 = vmatpush1.msra.mxu0 %v43
  %175 = vmatprep.subr.mxu0 0.0
  %176 = vmatpush1.msra.mxu0 %v42
  %177 = vmatprep.subr.mxu0 0.0
  %178 = vmatpush1.msra.mxu0 %v41
  %179 = vmatprep.subr.mxu0 0.0
  %180 = vmatpush1.msra.mxu0 %v40
  %181 = vmatprep.subr.mxu0 0.0
  %182 = vmatpush1.msra.mxu0 %v39
  %183 = vmatprep.subr.mxu0 0.0
  %184 = vmatpush1.msra.mxu0 %v38
  %185 = vmatprep.subr.mxu0 0.0
  %186 = vmatpush1.msra.mxu0 %v37
  %187 = vmatprep.subr.mxu0 0.0
  %188 = vmatpush1.msra.mxu0 %v36
  %189 = vmatprep.subr.mxu0 0.0
  %190 = vmatpush1.msra.mxu0 %v35
  %191 = vmatprep.subr.mxu0 0.0
  %192 = vmatpush1.msra.mxu0 %v34
  %193 = vmatprep.subr.mxu0 0.0
  %194 = vmatpush2.msra.mxu0 %v65
  %195 = vmatprep.subr.mxu0 0.0
  %196 = vmatpush2.msra.mxu0 %v64
  %197 = vmatprep.subr.mxu0 0.0
  %198 = vmatpush2.msra.mxu0 %v63
  %199 = vmatprep.subr.mxu0 0.0
  %200 = vmatpush2.msra.mxu0 %v62
  %201 = vmatprep.subr.mxu0 0.0
  %202 = vmatpush2.msra.mxu0 %v61
  %203 = vmatprep.subr.mxu0 0.0
  %204 = vmatpush2.msra.mxu0 %v60
  %205 = vmatprep.subr.mxu0 0.0
  %206 = vmatpush2.msra.mxu0 %v59
  %207 = vmatprep.subr.mxu0 0.0
  %208 = vmatpush2.msra.mxu0 %v58
  %209 = vmatprep.subr.mxu0 0.0
  %210 = vmatpush2.msra.mxu0 %v57
  %211 = vmatprep.subr.mxu0 0.0
  %212 = vmatpush2.msra.mxu0 %v56
  %213 = vmatprep.subr.mxu0 0.0
  %214 = vmatpush2.msra.mxu0 %v55
  %215 = vmatprep.subr.mxu0 0.0
  %216 = vmatpush2.msra.mxu0 %v54
  %217 = vmatprep.subr.mxu0 0.0
  %218 = vmatpush2.msra.mxu0 %v53
  %219 = vmatprep.subr.mxu0 0.0
  %220 = vmatpush2.msra.mxu0 %v52
  %221 = vmatprep.subr.mxu0 0.0
  %222 = vmatpush2.msra.mxu0 %v51
  %223 = vmatprep.subr.mxu0 0.0
  %224 = vmatpush2.msra.mxu0 %v50
  %225 = vmatprep.mubr.f32.mxu0 %v31
  %226 = vmatmul.mubr.f32.gmra.mxu0 %v30
  %v227 = vpop.f32.mrf.mxu0
  %v228 = vadd.f32 %v159, %v227
  %v229 = vpop.f32.mrf.mxu0
  %230 = vdwg.mxu0
  %v231 = vadd.f32 %v228, %v147
  %v232 = vmax.f32 %v231, 0.0
  %v233 = vadd.f32 %v228, %v152
  %v234 = vmax.f32 %v233, 0.0
  %v236 = vlaneseq
  %v237 = vshrl.u32 %v236, 7
  %v238 = vsub.s32 0, %v237
  %v239 = vrot.slane %v71, %v238
  %v241 = vmul.f32 %v232, %v239
  %v242 = vsel %vm73, %v241, 0.0
  %243 = vadd.xlane.f32.xlu0 %v242
  %v244 = vpop.xlane.xlu0 %243
  %v245 = vstv %s72
  %v246 = vadd.f32 %v244, %v245
  %vm247 = vcmask 7168
  %248 = vst.msk [vmem:[%s8] sm:$0xff] %vm247, %v246
  %v249 = vmul.f32 %v234, %v239
  %v250 = vsel %vm73, %v249, 0.0
  %251 = vadd.xlane.f32.xlu0 %v250
  %v252 = vpop.xlane.xlu0 %251
  %v253 = vadd.f32 %v252, %v245
  %vm254 = vcmask 15368
  %255 = vst.msk [vmem:[%s8] sm:$0xff] %vm254, %v253
  // Predicated region
  $region34: #{_mine_mlp_pallas.1} parent=0 // pred_check
    _
  $region35: #{_mine_mlp_pallas.1} parent=0 // pred_check_branch
    %257 = sbr.rel (0) target = $region37
  $region36: #{_mine_mlp_pallas.1} parent=0 // pred_region
    _
  $region37: #{_mine_mlp_pallas.1} parent=0 // pred_fallthru
    _
  // Predicated region
  $region38: #{_mine_mlp_pallas.1} parent=0 // pred_check
    _
  $region39: #{_mine_mlp_pallas.1} parent=0 // pred_check_branch
    %259 = sbr.rel (0) target = $region41
  $region40: #{_mine_mlp_pallas.1} parent=0 // pred_region
    _
  $region41: #{_mine_mlp_pallas.1} parent=0 // pred_fallthru
    _

</llo_original>
